<compile_context>
chip_gen: v5e
topology: v5e:2x2
jax: 0.10.0
libtpu: 0.0.40
codegen_flags: <defaults>
</compile_context>

<pallas_src>
import functools

import jax
import jax.numpy as jnp
from jax import lax
from jax.experimental import pallas as pl
from jax.experimental.pallas import tpu as pltpu


def _flash_attn_kernel(seed_ref, q_ref, k_ref, v_ref, o_ref,
                       m_sc, l_sc, acc_sc, *,
                       inv_scale: float,
                       keep_prob: float,
                       dropout_threshold: int,
                       use_dropout: bool):
    """One grid step = one (batch, q-tile, kv-tile) triple.

    q_ref: (tq, D), k_ref/v_ref: (tk, D), o_ref: (tq, D) VMEM blocks
    (leading batch dim squeezed away by the BlockSpec).
    m_sc/l_sc: (tq, 1) f32 running max / running sum, acc_sc: (tq, D) f32.
    """
    ki = pl.program_id(2)
    n_kv = pl.num_programs(2)

    @pl.when(ki == 0)
    def _init():
        m_sc[...] = jnp.full(m_sc.shape, -jnp.inf, dtype=m_sc.dtype)
        l_sc[...] = jnp.zeros(l_sc.shape, dtype=l_sc.dtype)
        acc_sc[...] = jnp.zeros(acc_sc.shape, dtype=acc_sc.dtype)

    # Fold the scale into Q (S x D multiply instead of S x S divide).
    q = q_ref[...].astype(jnp.float32) * inv_scale          # (tq, D)
    k = k_ref[...]                                           # (tk, D)
    v = v_ref[...]                                           # (tk, D)

    # scores = q @ k^T, contracting over D (no materialized transpose).
    s = lax.dot_general(q, k,
                        dimension_numbers=(((1,), (1,)), ((), ())),
                        preferred_element_type=jnp.float32)  # (tq, tk)

    # Online softmax (unnormalized).
    m_prev = m_sc[...]                                       # (tq, 1)
    m_new = jnp.maximum(m_prev, jnp.max(s, axis=-1, keepdims=True))
    alpha = jnp.exp(m_prev - m_new)                          # (tq, 1)
    e = jnp.exp(s - m_new)                                   # (tq, tk)

    # Denominator uses the *unmasked* exponentials (softmax happens before
    # dropout in the reference module).
    l_sc[...] = alpha * l_sc[...] + jnp.sum(e, axis=-1, keepdims=True)

    p = e
    if use_dropout:
        # PyTorch F.dropout semantics: zero with prob p, scale survivors by
        # 1/(1-p). The 1/(1-p) rescale is folded into the final reciprocal.
        pltpu.prng_seed(seed_ref[0]
                        + (pl.program_id(0) * pl.num_programs(1)
                           + pl.program_id(1)) * n_kv + ki)
        bits = pltpu.bitcast(pltpu.prng_random_bits(e.shape), jnp.uint32)
        keep = bits < jnp.uint32(dropout_threshold)
        p = jnp.where(keep, e, 0.0)

    acc_sc[...] = alpha * acc_sc[...] + jnp.dot(
        p.astype(v.dtype), v, preferred_element_type=jnp.float32)
    m_sc[...] = m_new

    @pl.when(ki == n_kv - 1)
    def _finalize():
        inv_l = pl.reciprocal(l_sc[...])                     # (tq, 1)
        if use_dropout:
            inv_l = inv_l * (1.0 / keep_prob)
        o_ref[...] = (acc_sc[...] * inv_l).astype(o_ref.dtype)


def _pick_tile(s: int) -> int:
    """Largest seq tile (MXU-friendly multiple) that divides S, else S."""
    for t in (512, 256, 128):
        if s % t == 0:
            return t
    return s  # small / odd S: single block along that axis


def scaled_dot_product_attention(query, key, value, scale_factor, dropout_p,
                                 seed=0, tq=None, tk=None):
    """Pallas TPU implementation of the PyTorch Model.forward."""
    B, S, D = query.shape
    assert key.shape == (B, S, D) and value.shape == (B, S, D)

    dropout_p = float(dropout_p)
    if dropout_p >= 1.0:
        # Everything is dropped (PyTorch returns all zeros).
        return jnp.zeros((B, S, D), query.dtype)

    use_dropout = dropout_p > 0.0
    inv_scale = 1.0 / float(scale_factor)
    keep_prob = 1.0 - dropout_p
    # keep element iff uint32 random bits < keep_prob * 2^32
    dropout_threshold = min(int(keep_prob * (2.0 ** 32)), 2 ** 32 - 1)

    tq = tq or _pick_tile(S)
    tk = tk or _pick_tile(S)
    assert S % tq == 0 and S % tk == 0

    seed_arr = jnp.asarray([seed], dtype=jnp.int32)

    kernel = functools.partial(
        _flash_attn_kernel,
        inv_scale=inv_scale,
        keep_prob=keep_prob,
        dropout_threshold=dropout_threshold,
        use_dropout=use_dropout,
    )

    grid = (B, S // tq, S // tk)
    grid_spec = pltpu.PrefetchScalarGridSpec(
        num_scalar_prefetch=1,                 # seed -> SMEM
        grid=grid,
        in_specs=[
            pl.BlockSpec((None, tq, D), lambda b, qi, ki, sref: (b, qi, 0)),
            pl.BlockSpec((None, tk, D), lambda b, qi, ki, sref: (b, ki, 0)),
            pl.BlockSpec((None, tk, D), lambda b, qi, ki, sref: (b, ki, 0)),
        ],
        out_specs=pl.BlockSpec((None, tq, D), lambda b, qi, ki, sref: (b, qi, 0)),
        scratch_shapes=[
            pltpu.VMEM((tq, 1), jnp.float32),   # running max
            pltpu.VMEM((tq, 1), jnp.float32),   # running sum
            pltpu.VMEM((tq, D), jnp.float32),   # output accumulator
        ],
    )

    return pl.pallas_call(
        kernel,
        out_shape=jax.ShapeDtypeStruct((B, S, D), query.dtype),
        grid_spec=grid_spec,
        compiler_params=pltpu.CompilerParams(
            dimension_semantics=("parallel", "parallel", "arbitrary")),
    )(seed_arr, query, key, value)


def _reference(query, key, value, scale_factor):
    qk = jnp.einsum("bqd,bkd->bqk", query, key) / scale_factor
    probs = jax.nn.softmax(qk, axis=-1)
    return jnp.einsum("bqk,bkd->bqd", probs, value)


if __name__ == "__main__":
    # --- small, module-consistent shapes (single block per batch) ---
    B, S, D = 2, 8, 32
    keyrng = jax.random.PRNGKey(0)
    kq, kk, kv = jax.random.split(keyrng, 3)
    query = jax.random.normal(kq, (B, S, D), dtype=jnp.float32)
    key = jax.random.normal(kk, (B, S, D), dtype=jnp.float32)
    value = jax.random.normal(kv, (B, S, D), dtype=jnp.float32)

    scale_factor = float(D) ** 0.5
    dropout_p = 0.0   # deterministic run (dropout path is still implemented)

    out = scaled_dot_product_attention(query, key, value, scale_factor,
                                       dropout_p)
    out = jax.block_until_ready(out)
    ref = _reference(query, key, value, scale_factor)
    if not jnp.allclose(out, ref, atol=1e-5, rtol=1e-5):
        raise AssertionError("Pallas output does not match reference (small)")

    # --- exercise the tiled / online-softmax path (multi kv tiles) ---
    B2, S2, D2 = 2, 256, 64
    kq2, kk2, kv2 = jax.random.split(jax.random.PRNGKey(1), 3)
    q2 = jax.random.normal(kq2, (B2, S2, D2), dtype=jnp.float32)
    k2 = jax.random.normal(kk2, (B2, S2, D2), dtype=jnp.float32)
    v2 = jax.random.normal(kv2, (B2, S2, D2), dtype=jnp.float32)
    scale2 = float(D2) ** 0.5

    out2 = scaled_dot_product_attention(q2, k2, v2, scale2, 0.0,
                                        tq=128, tk=128)
    out2 = jax.block_until_ready(out2)
    ref2 = _reference(q2, k2, v2, scale2)
    if not jnp.allclose(out2, ref2, atol=1e-4, rtol=1e-4):
        raise AssertionError("Pallas output does not match reference (tiled)")

    print("KERNEL_OK")
</pallas_src>

<mosaic_0001>
module attributes {stable_mosaic.version = 11 : i64} {
  func.func @_flash_attn_kernel(%arg0: i32, %arg1: i32, %arg2: i32, %arg3: memref<1xi32, #tpu.memory_space<smem>>, %arg4: memref<1x8x32xf32, #tpu.memory_space<vmem>>, %arg5: memref<1x8x32xf32, #tpu.memory_space<vmem>>, %arg6: memref<1x8x32xf32, #tpu.memory_space<vmem>>, %arg7: memref<1x8x32xf32, #tpu.memory_space<vmem>>, %arg8: memref<8x1xf32, #tpu.memory_space<vmem>>, %arg9: memref<8x1xf32, #tpu.memory_space<vmem>>, %arg10: memref<8x32xf32, #tpu.memory_space<vmem>>) attributes {dimension_semantics = [#tpu.dimension_semantics<parallel>, #tpu.dimension_semantics<parallel>, #tpu.dimension_semantics<arbitrary>], iteration_bounds = array<i64: 2, 1, 1>, scalar_prefetch = 1 : i64, scratch_operands = 3 : i64, tpu.core_type = #tpu.core_type<tc>, window_params = [{transform_indices = @transform_0, window_bounds = array<i64: 1, 8, 32>}, {transform_indices = @transform_1, window_bounds = array<i64: 1, 8, 32>}, {transform_indices = @transform_2, window_bounds = array<i64: 1, 8, 32>}, {transform_indices = @transform_3, window_bounds = array<i64: 1, 8, 32>}]} {
    %c0_i32 = arith.constant 0 : i32
    %0 = arith.cmpi eq, %arg2, %c0_i32 : i32
    %1 = arith.extui %0 : i1 to i32
    %c0_i32_0 = arith.constant 0 : i32
    %2 = arith.cmpi ne, %1, %c0_i32_0 : i32
    scf.if %2 {
      %cst_27 = arith.constant 0xFF800000 : f32
      %37 = vector.broadcast %cst_27 : f32 to vector<8x1xf32>
      %c0_28 = arith.constant 0 : index
      %c0_29 = arith.constant 0 : index
      %38 = vector.load %arg8[%c0_28, %c0_29] : memref<8x1xf32, #tpu.memory_space<vmem>>, vector<8x1xf32>
      tpu.vector_store %arg8[%c0_28, %c0_29], %37 {strides = array<i32>} : memref<8x1xf32, #tpu.memory_space<vmem>>, vector<8x1xf32>,
      %cst_30 = arith.constant 0.000000e+00 : f32
      %39 = vector.broadcast %cst_30 : f32 to vector<8x1xf32>
      %c0_31 = arith.constant 0 : index
      %c0_32 = arith.constant 0 : index
      %40 = vector.load %arg9[%c0_31, %c0_32] : memref<8x1xf32, #tpu.memory_space<vmem>>, vector<8x1xf32>
      tpu.vector_store %arg9[%c0_31, %c0_32], %39 {strides = array<i32>} : memref<8x1xf32, #tpu.memory_space<vmem>>, vector<8x1xf32>,
      %cst_33 = arith.constant 0.000000e+00 : f32
      %41 = vector.broadcast %cst_33 : f32 to vector<8x32xf32>
      %c0_34 = arith.constant 0 : index
      %c0_35 = arith.constant 0 : index
      %42 = vector.load %arg10[%c0_34, %c0_35] : memref<8x32xf32, #tpu.memory_space<vmem>>, vector<8x32xf32>
      tpu.vector_store %arg10[%c0_34, %c0_35], %41 {strides = array<i32>} : memref<8x32xf32, #tpu.memory_space<vmem>>, vector<8x32xf32>,
    } else {
    }
    %c0 = arith.constant 0 : index
    %c0_1 = arith.constant 0 : index
    %c0_2 = arith.constant 0 : index
    %3 = vector.load %arg4[%c0, %c0_1, %c0_2] : memref<1x8x32xf32, #tpu.memory_space<vmem>>, vector<1x8x32xf32>
    %4 = vector.shape_cast %3 : vector<1x8x32xf32> to vector<8x32xf32>
    %cst = arith.constant 0.176776692 : f32
    %5 = vector.broadcast %cst : f32 to vector<8x32xf32>
    %6 = arith.mulf %4, %5 : vector<8x32xf32>
    %c0_3 = arith.constant 0 : index
    %c0_4 = arith.constant 0 : index
    %c0_5 = arith.constant 0 : index
    %7 = vector.load %arg5[%c0_3, %c0_4, %c0_5] : memref<1x8x32xf32, #tpu.memory_space<vmem>>, vector<1x8x32xf32>
    %8 = vector.shape_cast %7 : vector<1x8x32xf32> to vector<8x32xf32>
    %c0_6 = arith.constant 0 : index
    %c0_7 = arith.constant 0 : index
    %c0_8 = arith.constant 0 : index
    %9 = vector.load %arg6[%c0_6, %c0_7, %c0_8] : memref<1x8x32xf32, #tpu.memory_space<vmem>>, vector<1x8x32xf32>
    %10 = vector.shape_cast %9 : vector<1x8x32xf32> to vector<8x32xf32>
    %cst_9 = arith.constant dense<0.000000e+00> : vector<8x8xf32>
    %11 = tpu.matmul %6, %8, %cst_9 {dimension_numbers = #tpu.dot_dimension_numbers<[1], [1], [0], [0], [0, 0, 1, 0], [], []>} : vector<8x32xf32>, vector<8x32xf32>, vector<8x8xf32> -> vector<8x8xf32>
    %c0_10 = arith.constant 0 : index
    %c0_11 = arith.constant 0 : index
    %12 = vector.load %arg8[%c0_10, %c0_11] : memref<8x1xf32, #tpu.memory_space<vmem>>, vector<8x1xf32>
    %cst_12 = arith.constant dense<0xFF800000> : vector<8xf32>
    %13 = vector.multi_reduction <maximumf>, %11, %cst_12 [1] : vector<8x8xf32> to vector<8xf32>
    %14 = vector.shape_cast %13 : vector<8xf32> to vector<8x1xf32>
    %15 = arith.maximumf %12, %14 : vector<8x1xf32>
    %16 = arith.subf %12, %15 : vector<8x1xf32>
    %17 = math.exp %16 : vector<8x1xf32>
    %18 = vector.broadcast %15 : vector<8x1xf32> to vector<8x8xf32>
    %19 = arith.subf %11, %18 : vector<8x8xf32>
    %20 = math.exp %19 : vector<8x8xf32>
    %c0_13 = arith.constant 0 : index
    %c0_14 = arith.constant 0 : index
    %21 = vector.load %arg9[%c0_13, %c0_14] : memref<8x1xf32, #tpu.memory_space<vmem>>, vector<8x1xf32>
    %22 = arith.mulf %17, %21 : vector<8x1xf32>
    %cst_15 = arith.constant dense<0.000000e+00> : vector<8xf32>
    %23 = vector.multi_reduction <add>, %20, %cst_15 [1] : vector<8x8xf32> to vector<8xf32>
    %24 = vector.shape_cast %23 : vector<8xf32> to vector<8x1xf32>
    %25 = arith.addf %22, %24 : vector<8x1xf32>
    %c0_16 = arith.constant 0 : index
    %c0_17 = arith.constant 0 : index
    %26 = vector.load %arg9[%c0_16, %c0_17] : memref<8x1xf32, #tpu.memory_space<vmem>>, vector<8x1xf32>
    tpu.vector_store %arg9[%c0_16, %c0_17], %25 {strides = array<i32>} : memref<8x1xf32, #tpu.memory_space<vmem>>, vector<8x1xf32>,
    %c0_18 = arith.constant 0 : index
    %c0_19 = arith.constant 0 : index
    %27 = vector.load %arg10[%c0_18, %c0_19] : memref<8x32xf32, #tpu.memory_space<vmem>>, vector<8x32xf32>
    %28 = vector.broadcast %17 : vector<8x1xf32> to vector<8x32xf32>
    %29 = arith.mulf %28, %27 : vector<8x32xf32>
    %cst_20 = arith.constant dense<0.000000e+00> : vector<8x32xf32>
    %30 = tpu.matmul %20, %10, %cst_20 {dimension_numbers = #tpu.dot_dimension_numbers<[1], [0], [0], [1], [0, 0, 1, 1], [], []>} : vector<8x8xf32>, vector<8x32xf32>, vector<8x32xf32> -> vector<8x32xf32>
    %31 = arith.addf %29, %30 : vector<8x32xf32>
    %c0_21 = arith.constant 0 : index
    %c0_22 = arith.constant 0 : index
    %32 = vector.load %arg10[%c0_21, %c0_22] : memref<8x32xf32, #tpu.memory_space<vmem>>, vector<8x32xf32>
    tpu.vector_store %arg10[%c0_21, %c0_22], %31 {strides = array<i32>} : memref<8x32xf32, #tpu.memory_space<vmem>>, vector<8x32xf32>,
    %c0_23 = arith.constant 0 : index
    %c0_24 = arith.constant 0 : index
    %33 = vector.load %arg8[%c0_23, %c0_24] : memref<8x1xf32, #tpu.memory_space<vmem>>, vector<8x1xf32>
    tpu.vector_store %arg8[%c0_23, %c0_24], %15 {strides = array<i32>} : memref<8x1xf32, #tpu.memory_space<vmem>>, vector<8x1xf32>,
    %c0_i32_25 = arith.constant 0 : i32
    %34 = arith.cmpi eq, %arg2, %c0_i32_25 : i32
    %35 = arith.extui %34 : i1 to i32
    %c0_i32_26 = arith.constant 0 : i32
    %36 = arith.cmpi ne, %35, %c0_i32_26 : i32
    scf.if %36 {
      %c0_27 = arith.constant 0 : index
      %c0_28 = arith.constant 0 : index
      %37 = vector.load %arg9[%c0_27, %c0_28] : memref<8x1xf32, #tpu.memory_space<vmem>>, vector<8x1xf32>
      %38 = tpu.reciprocal %37 : vector<8x1xf32> -> vector<8x1xf32>
      %c0_29 = arith.constant 0 : index
      %c0_30 = arith.constant 0 : index
      %39 = vector.load %arg10[%c0_29, %c0_30] : memref<8x32xf32, #tpu.memory_space<vmem>>, vector<8x32xf32>
      %40 = vector.broadcast %38 : vector<8x1xf32> to vector<8x32xf32>
      %41 = arith.mulf %39, %40 : vector<8x32xf32>
      %c0_31 = arith.constant 0 : index
      %c0_32 = arith.constant 0 : index
      %c0_33 = arith.constant 0 : index
      %42 = vector.load %arg7[%c0_31, %c0_32, %c0_33] : memref<1x8x32xf32, #tpu.memory_space<vmem>>, vector<1x8x32xf32>
      %43 = vector.shape_cast %42 : vector<1x8x32xf32> to vector<8x32xf32>
      %44 = vector.shape_cast %41 : vector<8x32xf32> to vector<1x8x32xf32>
      tpu.vector_store %arg7[%c0_31, %c0_32, %c0_33], %44 {strides = array<i32>} : memref<1x8x32xf32, #tpu.memory_space<vmem>>, vector<1x8x32xf32>,
    } else {
    }
    return
  }
  func.func @transform_0(%arg0: i32, %arg1: i32, %arg2: i32, %arg3: memref<1xi32, #tpu.memory_space<smem>>) -> (i32, i32, i32) {
    %c0_i32 = arith.constant 0 : i32
    %c0_i32_0 = arith.constant 0 : i32
    return %arg0, %arg1, %c0_i32 : i32, i32, i32
  }
  func.func @transform_1(%arg0: i32, %arg1: i32, %arg2: i32, %arg3: memref<1xi32, #tpu.memory_space<smem>>) -> (i32, i32, i32) {
    %c0_i32 = arith.constant 0 : i32
    %c0_i32_0 = arith.constant 0 : i32
    return %arg0, %arg2, %c0_i32 : i32, i32, i32
  }
  func.func @transform_2(%arg0: i32, %arg1: i32, %arg2: i32, %arg3: memref<1xi32, #tpu.memory_space<smem>>) -> (i32, i32, i32) {
    %c0_i32 = arith.constant 0 : i32
    %c0_i32_0 = arith.constant 0 : i32
    return %arg0, %arg2, %c0_i32 : i32, i32, i32
  }
  func.func @transform_3(%arg0: i32, %arg1: i32, %arg2: i32, %arg3: memref<1xi32, #tpu.memory_space<smem>>) -> (i32, i32, i32) {
    %c0_i32 = arith.constant 0 : i32
    %c0_i32_0 = arith.constant 0 : i32
    return %arg0, %arg1, %c0_i32 : i32, i32, i32
  }
}

</mosaic_0001>

<llo_original>
// kernel: tpu_custom_call.1
$region0: #{tpu_custom_call.1}
  #allocation0 [shape = 'u32[]', space=smem, size = 0x4, offset = 0x4, fixed_abs, tag = 'smem constant byte address 0x4 - core index']
  #allocation1 [shape = 'u32[72,128]{1,0:T(1,128)}', space=vmem, size = 0x9000, scoped, tag = 'internal scratch']
  #allocation2 [shape = 'f32[8,1]{1,0:T(8,128)}', space=vmem, size = 0x1000, scoped, tag = 'scratch operand']
  #allocation3 [shape = 'f32[8,1]{1,0:T(8,128)}', space=vmem, size = 0x1000, scoped, tag = 'scratch operand']
  #allocation4 [shape = 'f32[8,32]{1,0:T(8,128)}', space=vmem, size = 0x1000, scoped, tag = 'scratch operand']
  #allocation5 [shape = 's32[1]{0}', space=sflag, size = 0x4, scoped, tag = 'scoped memory for tpu_custom_call.1']
  #allocation6 [shape = 's32[1]{0:T(128)S(6)}', space=smem, size = 0x200, scoped, tag = 'prefetched SMEM operand 0']
  %s0 = inlined_call_operand.<no memory space> [shape: s32[1], index: 0, kind: input, shape index: {}]
  %s1 = inlined_call_operand.hbm [shape: f32[2,8,32], index: 1, kind: input, shape index: {}]
  %s2 = inlined_call_operand.hbm [shape: f32[2,8,32], index: 2, kind: input, shape index: {}]
  %s3 = inlined_call_operand.hbm [shape: f32[2,8,32], index: 3, kind: input, shape index: {}]
  %s4 = inlined_call_operand.hbm [shape: f32[2,8,32], index: 4, kind: output, shape index: {}]
  %s5 = sld [smem:[#allocation0]]
  $region65: #{tpu_custom_call.1} parent=0
    _
  %s7 = ssub.s32 1, %s5
  %s8 = scalar_select 0, %s7, %s5
  %9 = sst [smem:[#allocation6]] %s0
  $region1: #{tpu_custom_call.1} parent=0
    #allocation7 [shape = 'u8[8192]{0}', space=vmem, size = 0x2000, scoped, tag = 'input window, operand 1']
    #allocation8 [shape = 's32[2]{0}', space=sflag, size = 0x8, scoped, tag = 'scoped memory for tpu_custom_call.1']
    #allocation9 [shape = 's32[2]{0}', space=sflag, size = 0x8, scoped, tag = 'scoped memory for tpu_custom_call.1']
    #allocation10 [shape = 'u8[8192]{0}', space=vmem, size = 0x2000, scoped, tag = 'input window, operand 2']
    #allocation11 [shape = 's32[2]{0}', space=sflag, size = 0x8, scoped, tag = 'scoped memory for tpu_custom_call.1']
    #allocation12 [shape = 'u8[8192]{0}', space=vmem, size = 0x2000, scoped, tag = 'input window, operand 3']
    #allocation13 [shape = 'u8[8192]{0}', space=vmem, size = 0x2000, scoped, tag = 'output window, operand 0']
    %10 = vsyncpa [#allocation8], 0
    %s11 = scalar_lea.sflag [#allocation8], 1
    %12 = vsyncpa %s11, 0
    %13 = vsyncpa [#allocation11], 0
    %s14 = scalar_lea.sflag [#allocation11], 1
    %15 = vsyncpa %s14, 0
    %16 = vsyncpa [#allocation9], 0
    %s17 = scalar_lea.sflag [#allocation9], 1
    %18 = vsyncpa %s17, 0
    loop: start=0, step=1, limit=4
    $region2: #{tpu_custom_call.1} parent=1 // loop_pre_header
      _
    $region3: #{tpu_custom_call.1} parent=1 // loop_header
      %s20 = sphi 0, %s24
      %p21 = scmp.ge.s32.totalorder %s20, 4
      %s27 = sphi 0, %s46
      %s28 = sphi 0, %s42
      %s29 = sphi 0, %s38
      %s30 = sphi 0, %s27
      %s31 = sphi 0, %s28
      %s32 = sphi 0, %s29
      %s33 = sphi 0, %s30
      %s34 = sphi 0, %s31
      %s35 = sphi 0, %s32
      %s51 = sphi 0, %s53
      %s54 = sphi 0, %s51
      %s55 = sphi 0, %s54
      %s71 = sphi 0, %s55
      %s79 = sphi 0, %s81
      %s82 = sphi 0, %s79
      %s83 = sphi 0, %s82
      %s99 = sphi 0, %s83
      %s107 = sphi 0, %s109
      %s110 = sphi 0, %s107
      %s111 = sphi 0, %s110
      %s127 = sphi 0, %s111
      %s135 = sphi 0, %s137
      %s138 = sphi 0, %s135
      %s139 = sphi 0, %s138
      %s155 = sphi 0, %s139
    $region4: #{tpu_custom_call.1} parent=1 // loop_header_branch
      %23 = sbr.rel (%p21) target = $region8
    $region5: #{tpu_custom_call.1} parent=1 // loop_body
      %s25 = ssub.s32 %s20, 1
      %s26 = ssub.s32 %s20, 2
      %s36 = sadd.s32 1, %s29
      %p37 = scmp.ge.s32.totalorder %s36, 1
      %s38 = scalar_select %p37, 0, %s36
      %s39 = sadd.s32 1, %s28
      %s40 = scalar_select %p37, %s39, %s28
      %p41 = scmp.ge.s32.totalorder %s40, 1
      %s42 = scalar_select %p41, 0, %s40
      %s43 = sadd.s32 1, %s27
      %s44 = scalar_select %p41, %s43, %s27
      %p45 = scmp.ge.s32.totalorder %s44, 2
      %s46 = scalar_select %p45, 0, %s44
      %s47 = ssub.s32 %s27, %s46
      %s48 = ssub.s32 %s28, %s42
      %s49 = sor.u32 %s47, %s48
      %p50 = scmp.eq.s32.totalorder %s49, 0
      %s52 = sadd.s32 %s51, 1
      %s53 = scalar_select %p50, %s51, %s52
      %p56 = pneg %p50
      %p57 = scmp.eq.s32.totalorder %s20, 1
      %p58 = por %p56, %p57
      %p59 = scmp.ne.s32.totalorder %s51, %s54
      %p60 = scmp.eq.s32.totalorder %s20, 0
      %p61 = por %p59, %p60
      %p62 = scmp.ne.s32.totalorder %s51, %s54
      %p63 = scmp.eq.s32.totalorder %s25, 1
      %p64 = por %p62, %p63
      %p65 = scmp.ne.s32.totalorder %s54, %s55
      %p66 = scmp.eq.s32.totalorder %s25, 0
      %p67 = por %p65, %p66
      %p68 = scmp.ne.s32.totalorder %s54, %s55
      %p69 = scmp.eq.s32.totalorder %s26, 1
      %p70 = por %p68, %p69
      %p72 = scmp.ne.s32.totalorder %s55, %s71
      %p73 = scmp.eq.s32.totalorder %s26, 0
      %p74 = por %p72, %p73
      %s75 = ssub.s32 %s27, %s46
      %s76 = ssub.s32 %s29, %s38
      %s77 = sor.u32 %s75, %s76
      %p78 = scmp.eq.s32.totalorder %s77, 0
      %s80 = sadd.s32 %s79, 1
      %s81 = scalar_select %p78, %s79, %s80
      %p84 = pneg %p78
      %p85 = scmp.eq.s32.totalorder %s20, 1
      %p86 = por %p84, %p85
      %p87 = scmp.ne.s32.totalorder %s79, %s82
      %p88 = scmp.eq.s32.totalorder %s20, 0
      %p89 = por %p87, %p88
      %p90 = scmp.ne.s32.totalorder %s79, %s82
      %p91 = scmp.eq.s32.totalorder %s25, 1
      %p92 = por %p90, %p91
      %p93 = scmp.ne.s32.totalorder %s82, %s83
      %p94 = scmp.eq.s32.totalorder %s25, 0
      %p95 = por %p93, %p94
      %p96 = scmp.ne.s32.totalorder %s82, %s83
      %p97 = scmp.eq.s32.totalorder %s26, 1
      %p98 = por %p96, %p97
      %p100 = scmp.ne.s32.totalorder %s83, %s99
      %p101 = scmp.eq.s32.totalorder %s26, 0
      %p102 = por %p100, %p101
      %s103 = ssub.s32 %s27, %s46
      %s104 = ssub.s32 %s29, %s38
      %s105 = sor.u32 %s103, %s104
      %p106 = scmp.eq.s32.totalorder %s105, 0
      %s108 = sadd.s32 %s107, 1
      %s109 = scalar_select %p106, %s107, %s108
      %p112 = pneg %p106
      %p113 = scmp.eq.s32.totalorder %s20, 1
      %p114 = por %p112, %p113
      %p115 = scmp.ne.s32.totalorder %s107, %s110
      %p116 = scmp.eq.s32.totalorder %s20, 0
      %p117 = por %p115, %p116
      %p118 = scmp.ne.s32.totalorder %s107, %s110
      %p119 = scmp.eq.s32.totalorder %s25, 1
      %p120 = por %p118, %p119
      %p121 = scmp.ne.s32.totalorder %s110, %s111
      %p122 = scmp.eq.s32.totalorder %s25, 0
      %p123 = por %p121, %p122
      %p124 = scmp.ne.s32.totalorder %s110, %s111
      %p125 = scmp.eq.s32.totalorder %s26, 1
      %p126 = por %p124, %p125
      %p128 = scmp.ne.s32.totalorder %s111, %s127
      %p129 = scmp.eq.s32.totalorder %s26, 0
      %p130 = por %p128, %p129
      %s131 = ssub.s32 %s27, %s46
      %s132 = ssub.s32 %s28, %s42
      %s133 = sor.u32 %s131, %s132
      %p134 = scmp.eq.s32.totalorder %s133, 0
      %s136 = sadd.s32 %s135, 1
      %s137 = scalar_select %p134, %s135, %s136
      %p140 = pneg %p134
      %p141 = scmp.eq.s32.totalorder %s20, 1
      %p142 = por %p140, %p141
      %p143 = scmp.ne.s32.totalorder %s135, %s138
      %p144 = scmp.eq.s32.totalorder %s20, 0
      %p145 = por %p143, %p144
      %p146 = scmp.ne.s32.totalorder %s135, %s138
      %p147 = scmp.eq.s32.totalorder %s25, 1
      %p148 = por %p146, %p147
      %p149 = scmp.ne.s32.totalorder %s138, %s139
      %p150 = scmp.eq.s32.totalorder %s25, 0
      %p151 = por %p149, %p150
      %p152 = scmp.ne.s32.totalorder %s138, %s139
      %p153 = scmp.eq.s32.totalorder %s26, 1
      %p154 = por %p152, %p153
      %p156 = scmp.ne.s32.totalorder %s139, %s155
      %p157 = scmp.eq.s32.totalorder %s26, 0
      %p158 = por %p156, %p157
      %p159 = scmp.le.s32.totalorder 1, %s20
      %p160 = scmp.lt.s32.totalorder %s20, 3
      %p161 = pnand %p159, %p160
      %p162 = pneg %p161
      // Predicated region
      $region9: #{tpu_custom_call.1} parent=5 // pred_check
        _
      $region10: #{tpu_custom_call.1} parent=5 // pred_check_branch
        %164 = sbr.rel (%p161) target = $region12
      $region11: #{tpu_custom_call.1} parent=5 // pred_region
        %s165 = ssub.s32 %s20, 1
      $region12: #{tpu_custom_call.1} parent=5 // pred_fallthru
        _
      %p166 = scmp.lt.s32.totalorder %s20, 2
      // Predicated region
      $region13: #{tpu_custom_call.1} parent=5 // pred_check
        %p167 = pneg %p166
      $region14: #{tpu_custom_call.1} parent=5 // pred_check_branch
        %169 = sbr.rel (%p167) target = $region16
      $region15: #{tpu_custom_call.1} parent=5 // pred_region
        // Predicated region
        $region17: #{tpu_custom_call.1} parent=15 // pred_check
          %p170 = pneg %p61
        $region18: #{tpu_custom_call.1} parent=15 // pred_check_branch
          %172 = sbr.rel (%p170) target = $region20
        $region19: #{tpu_custom_call.1} parent=15 // pred_region
          %s173 = sand.u32 %s51, 1
          %s174 = scalar_lea.sflag [#allocation8], %s173
          %s175 = sand.u32 %s51, 1
          %s176 = smul.addr %s175, 8
          %s177 = scalar_lea.vmem [#allocation7], %s176
          %179 = vsyncadd %s174, 0
          %s180 = sadd.s32 %s28, %s27
          %s181 = smul.addr %s180, 8
          %s182 = scalar_lea.hbm %s1, %s181
          %s184 = sshll.u32 %s182, 4
          %s185 = int_to_ptr.hbm [resolvable:$true] %s184
          %s186 = sshll.u32 %s177, 4
          %s187 = int_to_ptr.vmem [resolvable:$true] %s186
          %189 = dma.hbm_to_vmem [thread:$0]  %s185, 128, %s187, %s174
        $region20: #{tpu_custom_call.1} parent=15 // pred_fallthru
          _
        // Predicated region
        $region21: #{tpu_custom_call.1} parent=15 // pred_check
          %p190 = pneg %p89
        $region22: #{tpu_custom_call.1} parent=15 // pred_check_branch
          %192 = sbr.rel (%p190) target = $region24
        $region23: #{tpu_custom_call.1} parent=15 // pred_region
          %s193 = sand.u32 %s20, 1
          %s194 = scalar_lea.sflag [#allocation11], %s193
          %s195 = sand.u32 %s79, 1
          %s196 = smul.addr %s195, 8
          %s197 = scalar_lea.vmem [#allocation10], %s196
          %199 = vsyncadd %s194, 0
          %s200 = sadd.s32 %s29, %s27
          %s201 = smul.addr %s200, 8
          %s202 = scalar_lea.hbm %s2, %s201
          %s204 = sshll.u32 %s202, 4
          %s205 = int_to_ptr.hbm [resolvable:$true] %s204
          %s206 = sshll.u32 %s197, 4
          %s207 = int_to_ptr.vmem [resolvable:$true] %s206
          %209 = dma.hbm_to_vmem [thread:$0]  %s205, 128, %s207, %s194
        $region24: #{tpu_custom_call.1} parent=15 // pred_fallthru
          _
        // Predicated region
        $region25: #{tpu_custom_call.1} parent=15 // pred_check
          %p210 = pneg %p117
        $region26: #{tpu_custom_call.1} parent=15 // pred_check_branch
          %212 = sbr.rel (%p210) target = $region28
        $region27: #{tpu_custom_call.1} parent=15 // pred_region
          %s213 = sand.u32 %s20, 1
          %s214 = scalar_lea.sflag [#allocation11], %s213
          %s215 = sand.u32 %s107, 1
          %s216 = smul.addr %s215, 8
          %s217 = scalar_lea.vmem [#allocation12], %s216
          %219 = vsyncadd %s214, 0
          %s220 = sadd.s32 %s29, %s27
          %s221 = smul.addr %s220, 8
          %s222 = scalar_lea.hbm %s3, %s221
          %s224 = sshll.u32 %s222, 4
          %s225 = int_to_ptr.hbm [resolvable:$true] %s224
          %s226 = sshll.u32 %s217, 4
          %s227 = int_to_ptr.vmem [resolvable:$true] %s226
          %229 = dma.hbm_to_vmem [thread:$0]  %s225, 128, %s227, %s214
        $region28: #{tpu_custom_call.1} parent=15 // pred_fallthru
          _
      $region16: #{tpu_custom_call.1} parent=5 // pred_fallthru
        _
      %p230 = scmp.le.s32.totalorder 1, %s20
      %p231 = scmp.lt.s32.totalorder %s20, 3
      %p232 = pnand %p230, %p231
      %p233 = pneg %p232
      // Predicated region
      $region29: #{tpu_custom_call.1} parent=5 // pred_check
        _
      $region30: #{tpu_custom_call.1} parent=5 // pred_check_branch
        %235 = sbr.rel (%p232) target = $region32
      $region31: #{tpu_custom_call.1} parent=5 // pred_region
        %s236 = ssub.s32 %s20, 1
        %s237 = sand.u32 %s54, 1
        %s238 = scalar_lea.sflag [#allocation8], %s237
        %s239 = sand.u32 %s54, 1
        %s240 = smul.addr %s239, 8
        %s241 = scalar_lea.vmem [#allocation7], %s240
        // Predicated region
        $region33: #{tpu_custom_call.1} parent=31 // pred_check
          %p242 = pneg %p67
        $region34: #{tpu_custom_call.1} parent=31 // pred_check_branch
          %244 = sbr.rel (%p242) target = $region36
        $region35: #{tpu_custom_call.1} parent=31 // pred_region
          %246 = dma.done %s238, 128
        $region36: #{tpu_custom_call.1} parent=31 // pred_fallthru
          _
        %s247 = sand.u32 %s25, 1
        %s248 = scalar_lea.sflag [#allocation11], %s247
        %s249 = sand.u32 %s82, 1
        %s250 = smul.addr %s249, 8
        %s251 = scalar_lea.vmem [#allocation10], %s250
        // Predicated region
        $region37: #{tpu_custom_call.1} parent=31 // pred_check
          %p252 = pneg %p95
        $region38: #{tpu_custom_call.1} parent=31 // pred_check_branch
          %254 = sbr.rel (%p252) target = $region40
        $region39: #{tpu_custom_call.1} parent=31 // pred_region
          %256 = dma.done %s248, 128
        $region40: #{tpu_custom_call.1} parent=31 // pred_fallthru
          _
        %s257 = sand.u32 %s25, 1
        %s258 = scalar_lea.sflag [#allocation11], %s257
        %s259 = sand.u32 %s110, 1
        %s260 = smul.addr %s259, 8
        %s261 = scalar_lea.vmem [#allocation12], %s260
        // Predicated region
        $region41: #{tpu_custom_call.1} parent=31 // pred_check
          %p262 = pneg %p123
        $region42: #{tpu_custom_call.1} parent=31 // pred_check_branch
          %264 = sbr.rel (%p262) target = $region44
        $region43: #{tpu_custom_call.1} parent=31 // pred_region
          %266 = dma.done %s258, 128
        $region44: #{tpu_custom_call.1} parent=31 // pred_fallthru
          _
        %s267 = sand.u32 %s54, 1
        %s268 = scalar_lea.sflag [#allocation8], %s267
        %s269 = sand.u32 %s54, 1
        %s270 = smul.addr %s269, 8
        %s271 = scalar_lea.vmem [#allocation7], %s270
        %p272 = pneg %p67
        %p273 = pneg %p64
        %s274 = sand.u32 %s25, 1
        %s275 = scalar_lea.sflag [#allocation11], %s274
        %s276 = sand.u32 %s82, 1
        %s277 = smul.addr %s276, 8
        %s278 = scalar_lea.vmem [#allocation10], %s277
        %p279 = pneg %p95
        %p280 = pneg %p92
        %s281 = sand.u32 %s25, 1
        %s282 = scalar_lea.sflag [#allocation11], %s281
        %s283 = sand.u32 %s110, 1
        %s284 = smul.addr %s283, 8
        %s285 = scalar_lea.vmem [#allocation12], %s284
        %p286 = pneg %p123
        %p287 = pneg %p120
        %p288 = pneg %p151
        %p289 = pneg %p148
        %s290 = sand.u32 %s138, 1
        %s291 = scalar_lea.sflag [#allocation9], %s290
        %s292 = sand.u32 %s138, 1
        %s293 = smul.addr %s292, 8
        %s294 = scalar_lea.vmem [#allocation13], %s293
        %p295 = scmp.eq.s32.totalorder %s32, 0
        // Predicated region
        $region45: #{tpu_custom_call.1} parent=31 // pred_check
          %p296 = pneg %p295
        $region46: #{tpu_custom_call.1} parent=31 // pred_check_branch
          %298 = sbr.rel (%p296) target = $region48
        $region47: #{tpu_custom_call.1} parent=31 // pred_region
          %vm299 = vcmask 7168
          %300 = vst.msk [vmem:[#allocation2] sm:$0xff] %vm299, -inf
          %301 = vst.msk [vmem:[#allocation3] sm:$0xff] %vm299, 0.0
          %vm302 = vcmask 261120
          %303 = vst.msk [vmem:[#allocation4] sm:$0xff] %vm302, 0.0
        $region48: #{tpu_custom_call.1} parent=31 // pred_fallthru
          _
        %v304 = vld [vmem:[%s241] sm:$0xff]
        %v305 = vmul.f32 %v304, 0.17677669
        %v306 = vld [vmem:[%s251] sm:$0xff]
        %v307 = vld [vmem:[%s261] sm:$0xff]
        %vm308 = vcmask 261120
        %v310 = vsel %vm308, %v305, 0
        %v313 = vsel %vm308, %v306, 0
        %315 = vmatpush.xpose.msra.mxu0 0.0
        %316 = vmatpush.xpose.msra.mxu0 0.0
        %317 = vmatpush.xpose.msra.mxu0 0.0
        %318 = vmatpush.xpose.msra.mxu0 0.0
        %319 = vmatpush.xpose.msra.mxu0 0.0
        %320 = vmatpush.xpose.msra.mxu0 0.0
        %321 = vmatpush.xpose.msra.mxu0 0.0
        %322 = vmatpush.xpose.msra.mxu0 0.0
        %323 = vmatpush.xpose.msra.mxu0 0.0
        %324 = vmatpush.xpose.msra.mxu0 0.0
        %325 = vmatpush.xpose.msra.mxu0 0.0
        %326 = vmatpush.xpose.msra.mxu0 0.0
        %327 = vmatpush.xpose.msra.mxu0 0.0
        %328 = vmatpush.xpose.msra.mxu0 0.0
        %329 = vmatpush.xpose.msra.mxu0 0.0
        %330 = vmatpush.xpose.msra.mxu0 %v313
        %331 = vmatmul.f32.gmra.mxu0 %v310
        %v332 = vpop.f32.mrf.mxu0
        %v333 = vadd.f32 0.0, %v332
        %334 = vdwg.mxu0
        %v335 = vld [vmem:[#allocation2] sm:$0xff]
        %vm336 = vcmask 64512
        %v337 = vsel %vm336, %v333, -inf
        %338 = vmax.xlane.f32.xlu0 %v337
        %v339 = vpop.xlane.xlu0 %338
        %v340 = vmax.f32 %v335, %v339
        %v341 = vsub.f32 %v335, %v340
        %v342 = vmul.f32 %v341, 1.442695
        %v343 = vpow.pop %v342
        %345 = vset.pattern.permute.xlu0 0
        %346 = vperm.xlu0 %345, %v340
        %v347 = vpop.permute.xlu0 %346
        %v349 = vsub.f32 %v333, %v347
        %v350 = vmul.f32 %v349, 1.442695
        %v351 = vpow.pop %v350
        %v352 = vld [vmem:[#allocation3] sm:$0xff]
        %v353 = vmul.f32 %v343, %v352
        %v354 = vsel %vm336, %v351, 0.0
        %355 = vadd.xlane.f32.xlu0 %v354
        %v356 = vpop.xlane.xlu0 %355
        %v357 = vadd.f32 %v353, %v356
        %vm358 = vcmask 7168
        %359 = vst.msk [vmem:[#allocation3] sm:$0xff] %vm358, %v357
        %v360 = vld [vmem:[#allocation4] sm:$0xff]
        %362 = vset.pattern.permute.xlu0 0
        %363 = vperm.xlu0 %362, %v343
        %v364 = vpop.permute.xlu0 %363
        %v366 = vmul.f32 %v364, %v360
        %v368 = vsel %vm336, %v351, 0
        %370 = vmatpush.msra.mxu0 0.0
        %371 = vmatpush.msra.mxu0 0.0
        %372 = vmatpush.msra.mxu0 0.0
        %373 = vmatpush.msra.mxu0 0.0
        %374 = vmatpush.msra.mxu0 0.0
        %375 = vmatpush.msra.mxu0 0.0
        %376 = vmatpush.msra.mxu0 0.0
        %377 = vmatpush.msra.mxu0 0.0
        %378 = vmatpush.msra.mxu0 0.0
        %379 = vmatpush.msra.mxu0 0.0
        %380 = vmatpush.msra.mxu0 0.0
        %381 = vmatpush.msra.mxu0 0.0
        %382 = vmatpush.msra.mxu0 0.0
        %383 = vmatpush.msra.mxu0 0.0
        %384 = vmatpush.msra.mxu0 0.0
        %385 = vmatpush.msra.mxu0 %v307
        %386 = vmatmul.f32.gmra.mxu0 %v368
        %v387 = vpop.f32.mrf.mxu0
        %v388 = vadd.f32 0.0, %v387
        %389 = vdwg.mxu0
        %v390 = vadd.f32 %v366, %v388
        %391 = vst.msk [vmem:[#allocation4] sm:$0xff] %vm308, %v390
        %392 = vst.msk [vmem:[#allocation2] sm:$0xff] %vm358, %v340
        // Predicated region
        $region49: #{tpu_custom_call.1} parent=31 // pred_check
          %p393 = pneg %p295
        $region50: #{tpu_custom_call.1} parent=31 // pred_check_branch
          %395 = sbr.rel (%p393) target = $region52
        $region51: #{tpu_custom_call.1} parent=31 // pred_region
          %v396 = vld [vmem:[#allocation3] sm:$0xff]
          %v397 = vrcp.pop %v396
          %v398 = vmul.f32 %v396, %v397
          %v399 = vsub.f32 1.0, %v398
          %v400 = vmul.f32 %v397, %v399
          %v401 = vadd.f32 %v397, %v400
          %vm402 = vweird.f32 %v396
          %vm403 = vweird.f32 %v397
          %vm404 = vmor %vm402, %vm403
          %v405 = vsel %vm404, %v397, %v401
          %v406 = vand.u32 2147483647, %v396
          %vm407 = vcmp.eq.f32.partialorder %v406, 8.507059e+37
          %v408 = vand.u32 %v396, 2147483648
          %v409 = vor.u32 1.1754944e-38, %v408
          %v410 = vsel %vm407, %v409, %v405
          %v411 = vld [vmem:[#allocation4] sm:$0xff]
          %413 = vset.pattern.permute.xlu0 0
          %414 = vperm.xlu0 %413, %v410
          %v415 = vpop.permute.xlu0 %414
          %v417 = vmul.f32 %v411, %v415
          %418 = vst.msk [vmem:[%s294] sm:$0xff] %vm308, %v417
        $region52: #{tpu_custom_call.1} parent=31 // pred_fallthru
          _
        %s419 = sand.u32 %s138, 1
        %s420 = scalar_lea.sflag [#allocation9], %s419
        %s421 = sand.u32 %s138, 1
        %s422 = smul.addr %s421, 8
        %s423 = scalar_lea.vmem [#allocation13], %s422
        // Predicated region
        $region53: #{tpu_custom_call.1} parent=31 // pred_check
          %p424 = pneg %p148
        $region54: #{tpu_custom_call.1} parent=31 // pred_check_branch
          %426 = sbr.rel (%p424) target = $region56
        $region55: #{tpu_custom_call.1} parent=31 // pred_region
          %428 = vsyncadd %s420, 0
          %s429 = sadd.s32 %s31, %s30
          %s430 = smul.addr %s429, 8
          %s431 = scalar_lea.hbm %s4, %s430
          %s433 = sshll.u32 %s423, 4
          %s434 = int_to_ptr.vmem [resolvable:$true] %s433
          %s435 = sshll.u32 %s431, 4
          %s436 = int_to_ptr.hbm [resolvable:$true] %s435
          %438 = dma.vmem_to_hbm [thread:$0]  %s434, 128, %s436, %s420
        $region56: #{tpu_custom_call.1} parent=31 // pred_fallthru
          _
      $region32: #{tpu_custom_call.1} parent=5 // pred_fallthru
        _
      %p439 = scmp.le.s32.totalorder 2, %s20
      // Predicated region
      $region57: #{tpu_custom_call.1} parent=5 // pred_check
        %p440 = pneg %p439
      $region58: #{tpu_custom_call.1} parent=5 // pred_check_branch
        %442 = sbr.rel (%p440) target = $region60
      $region59: #{tpu_custom_call.1} parent=5 // pred_region
        %s443 = ssub.s32 %s20, 2
        // Predicated region
        $region61: #{tpu_custom_call.1} parent=59 // pred_check
          %p444 = pneg %p154
        $region62: #{tpu_custom_call.1} parent=59 // pred_check_branch
          %446 = sbr.rel (%p444) target = $region64
        $region63: #{tpu_custom_call.1} parent=59 // pred_region
          %s447 = sand.u32 %s139, 1
          %s448 = scalar_lea.sflag [#allocation9], %s447
          %s449 = sand.u32 %s139, 1
          %s450 = smul.addr %s449, 8
          %s451 = scalar_lea.vmem [#allocation13], %s450
          %453 = dma.done %s448, 128
        $region64: #{tpu_custom_call.1} parent=59 // pred_fallthru
          _
      $region60: #{tpu_custom_call.1} parent=5 // pred_fallthru
        _
    $region6: #{tpu_custom_call.1} parent=1 // loop_footer
      %s24 = sadd.s32 1, %s20
    $region7: #{tpu_custom_call.1} parent=1 // loop_footer_branch
      %19 = sbr.rel target = $region3
    $region8: #{tpu_custom_call.1} parent=1 // loop_exit
      _
    %454 = vsyncpa [#allocation8], 1
    %s455 = scalar_lea.sflag [#allocation8], 1
    %456 = vsyncpa %s455, 1
    %457 = vsyncpa [#allocation11], 1
    %s458 = scalar_lea.sflag [#allocation11], 1
    %459 = vsyncpa %s458, 1
    %460 = vsyncpa [#allocation9], 1
    %s461 = scalar_lea.sflag [#allocation9], 1
    %462 = vsyncpa %s461, 1

</llo_original>
